<compile_context>
chip_gen: v5e
topology: v5e:2x2
jax: 0.10.0
libtpu: 0.0.40
codegen_flags: <defaults>
</compile_context>

<pallas_src>
import functools

import jax
import jax.numpy as jnp
from jax.experimental import pallas as pl
from jax.experimental.pallas import tpu as pltpu

LEAKY_SLOPE = 0.2
IN_EPS = 1e-8


def _affa_kernel(x_ref, mask_ref, w1_ref, b1_ref, w2_ref, b2_ref, out_ref,
                 *, H, W, C, Bb):
    # x_ref    : (Bb, 2C, Hp*Wp) concat([h, z], ch), zero-padded spatial, flattened lanes
    # mask_ref : (1, L)          1.0 at interior pixels, 0.0 at row-gap (pad) lanes
    # w1_ref   : (C, 9*2C)       conv1 weights, cols ordered (ky, kx, in-channel)
    # b1_ref   : (C, 1)
    # w2_ref   : (C, C)          conv2 (1x1) weights [out, in]
    # b2_ref   : (C, 1)
    # out_ref  : (Bb, C, L)      interior flat span of the blended output
    Wp = W + 2
    base = Wp + 1                    # flat index of interior pixel (0, 0)
    L = (H - 1) * Wp + W             # contiguous span covering all interior pixels

    m = mask_ref[...]                # (1, L)
    w1 = w1_ref[...]                 # (C, 18C)
    b1 = b1_ref[...]                 # (C, 1)
    w2 = w2_ref[...]                 # (C, C)
    b2 = b2_ref[...]                 # (C, 1)
    inv_n = 1.0 / float(H * W)

    for b in range(Bb):              # static unroll over the batch block
        x = x_ref[b].astype(jnp.float32)        # (2C, Hp*Wp)

        # conv1 (3x3, pad 1): 9 accumulating matmuls; no im2col patches matrix.
        center = x[:, base:base + L]            # reused for tap (1,1) and the blend
        acc = None
        for ky in range(3):
            for kx in range(3):
                t = ky * 3 + kx
                s = ky * Wp + kx
                rhs = center if s == base else x[:, s:s + L]
                part = jnp.dot(w1[:, t * 2 * C:(t + 1) * 2 * C], rhs,
                               preferred_element_type=jnp.float32)
                acc = part if acc is None else acc + part
        acc = acc + b1

        # LeakyReLU(0.2): mul+max (one fewer VPU op than cmp+select).
        acc = jnp.maximum(acc, LEAKY_SLOPE * acc)

        # InstanceNorm (affine-free), single fused sweep over the masked pixels.
        am = acc * m
        s1 = jnp.sum(am, axis=1, keepdims=True)            # (C, 1)
        s2 = jnp.sum(am * acc, axis=1, keepdims=True)       # (C, 1)
        mean = s1 * inv_n
        var = jnp.maximum(s2 * inv_n - mean * mean, 0.0)    # biased (PyTorch convention)
        xn = (acc - mean) * jax.lax.rsqrt(var + IN_EPS)

        # conv2 (1x1) == channel matmul, then sigmoid gate.
        gate = jax.nn.sigmoid(
            jnp.dot(w2, xn, preferred_element_type=jnp.float32) + b2)

        # Blend: (1+s)/2*h + (1-s)/2*z == 0.5*(h+z) + 0.5*s*(h-z).
        h_c = center[:C]
        z_c = center[C:]
        blend = 0.5 * (h_c + z_c) + 0.5 * gate * (h_c - z_c)

        # Lane-dense store of only the interior span (row gaps are zero: h = z = 0 there).
        out_ref[b] = blend.astype(out_ref.dtype)


def _pick_batch_block(B, C, H, W, budget_bytes=16 << 20, max_unroll=8):
    """Largest batch block that (a) divides B, (b) keeps double-buffered blocks in
    budget, (c) leaves >=2 grid steps when B >= 2 (2-TC chips), (d) bounds unroll."""
    Hp, Wp = H + 2, W + 2
    PF = Hp * Wp
    L = (H - 1) * Wp + W
    per_elem = 2 * (2 * C * PF + C * L) * 4      # double-buffered in + out, f32
    bb_cap = max(1, B // 2) if B >= 2 else 1
    best = 1
    for bb in range(1, min(B, max_unroll, bb_cap) + 1):
        if B % bb == 0 and bb * per_elem <= budget_bytes:
            best = bb
    return best


@jax.jit
def affa_forward(h_nchw, z_nchw, w1, b1, w2, b2):
    """h, z: (B, C, H, W) f32. w1: (3,3,2C,C) HWIO, w2: (1,1,C,C) HWIO. b1, b2: (C,)."""
    B, C, H, W = h_nchw.shape
    Hp, Wp = H + 2, W + 2
    PF = Hp * Wp
    L = (H - 1) * Wp + W
    base = Wp + 1
    Bb = _pick_batch_block(B, C, H, W)

    # One concat + one zero-pad in HBM; every in-kernel tensor is (channels, flat-spatial)
    # with the large flattened-spatial axis on the 128-wide lane dimension.
    xcat = jnp.concatenate([h_nchw, z_nchw], axis=1)                         # (B, 2C, H, W)
    xpad = jnp.pad(xcat, ((0, 0), (0, 0), (1, 1), (1, 1))).reshape(B, 2 * C, PF)

    # Valid-pixel mask over the interior flat span (excludes the 2-lane row gaps).
    mask = jnp.pad(jnp.ones((H, W), jnp.float32),
                   ((1, 1), (1, 1))).reshape(-1)[base:base + L].reshape(1, L)

    # conv1 weights: rows = out channel, cols = (ky, kx, in-channel) row-major,
    # matching the [h(0:C) | z(C:2C)] channel order of xcat.
    w1_mat = jnp.transpose(w1.reshape(9 * 2 * C, C)).astype(jnp.float32)     # (C, 18C)
    w2_mat = jnp.transpose(w2.reshape(C, C)).astype(jnp.float32)             # (C, C)
    b1_c = b1.reshape(C, 1).astype(jnp.float32)
    b2_c = b2.reshape(C, 1).astype(jnp.float32)

    def const(shape):
        return pl.BlockSpec(shape, lambda i: (0,) * len(shape))

    out_span = pl.pallas_call(
        functools.partial(_affa_kernel, H=H, W=W, C=C, Bb=Bb),
        out_shape=jax.ShapeDtypeStruct((B, C, L), h_nchw.dtype),
        grid_spec=pltpu.PrefetchScalarGridSpec(
            num_scalar_prefetch=0,
            grid=(B // Bb,),
            in_specs=[
                pl.BlockSpec((Bb, 2 * C, PF), lambda i: (i, 0, 0)),  # concat(h, z)
                const((1, L)),              # interior-pixel mask
                const((C, 9 * 2 * C)),      # conv1 weights
                const((C, 1)),              # conv1 bias
                const((C, C)),              # conv2 weights
                const((C, 1)),              # conv2 bias
            ],
            out_specs=pl.BlockSpec((Bb, C, L), lambda i: (i, 0, 0)),
        ),
        compiler_params=pltpu.CompilerParams(
            dimension_semantics=("parallel",),      # batch blocks are independent
            vmem_limit_bytes=32 << 20),
    )(xpad, mask, w1_mat, b1_c, w2_mat, b2_c)

    # Interior span -> (B, C, H, W): pad back each row's 2-lane gap, reshape, crop.
    out = jnp.pad(out_span, ((0, 0), (0, 0), (0, Wp - W)))
    return out.reshape(B, C, H, Wp)[:, :, :, :W]


def affa_reference(h, z, w1, b1, w2, b2):
    """Pure-JAX reference (NCHW), for correctness checking only."""
    x = jnp.concatenate([h, z], axis=1)
    w1_oihw = jnp.transpose(w1, (3, 2, 0, 1))
    y = jax.lax.conv_general_dilated(
        x, w1_oihw, window_strides=(1, 1), padding=((1, 1), (1, 1)),
        dimension_numbers=('NCHW', 'OIHW', 'NCHW'))
    y = y + b1[None, :, None, None]
    y = jnp.where(y > 0, y, LEAKY_SLOPE * y)
    mean = jnp.mean(y, axis=(2, 3), keepdims=True)
    yc = y - mean
    var = jnp.mean(yc * yc, axis=(2, 3), keepdims=True)
    yn = yc * jax.lax.rsqrt(var + IN_EPS)
    w2_oihw = jnp.transpose(w2, (3, 2, 0, 1))
    y2 = jax.lax.conv_general_dilated(
        yn, w2_oihw, window_strides=(1, 1), padding=((0, 0), (0, 0)),
        dimension_numbers=('NCHW', 'OIHW', 'NCHW'))
    y2 = y2 + b2[None, :, None, None]
    s = jax.nn.sigmoid(y2)
    return (1.0 + s) / 2.0 * h + (1.0 - s) / 2.0 * z


if __name__ == "__main__":
    B, C, H, W = 2, 4, 16, 16

    key = jax.random.PRNGKey(0)
    k_h, k_z, k_w1, k_b1, k_w2, k_b2 = jax.random.split(key, 6)

    h = jax.random.normal(k_h, (B, C, H, W), jnp.float32)
    z = jax.random.normal(k_z, (B, C, H, W), jnp.float32)

    # Deterministic synthetic parameters (HWIO layout).
    w1 = 0.1 * jax.random.normal(k_w1, (3, 3, 2 * C, C), jnp.float32)
    b1 = 0.1 * jax.random.normal(k_b1, (C,), jnp.float32)
    w2 = 0.1 * jax.random.normal(k_w2, (1, 1, C, C), jnp.float32)
    b2 = 0.1 * jax.random.normal(k_b2, (C,), jnp.float32)

    out = affa_forward(h, z, w1, b1, w2, b2)
    out = jax.block_until_ready(out)

    ref = jax.block_until_ready(affa_reference(h, z, w1, b1, w2, b2))
    assert out.shape == (B, C, H, W)
    assert jnp.allclose(out, ref, rtol=1e-4, atol=1e-4), "mismatch vs reference"

    print("KERNEL_OK")
</pallas_src>

<mosaic_0001>
module attributes {stable_mosaic.version = 11 : i64} {
  func.func @_affa_kernel(%arg0: i32, %arg1: memref<1x8x324xf32, #tpu.memory_space<vmem>>, %arg2: memref<1x286xf32, #tpu.memory_space<vmem>>, %arg3: memref<4x72xf32, #tpu.memory_space<vmem>>, %arg4: memref<4x1xf32, #tpu.memory_space<vmem>>, %arg5: memref<4x4xf32, #tpu.memory_space<vmem>>, %arg6: memref<4x1xf32, #tpu.memory_space<vmem>>, %arg7: memref<1x4x286xf32, #tpu.memory_space<vmem>>) attributes {dimension_semantics = [#tpu.dimension_semantics<parallel>], iteration_bounds = array<i64: 2>, scalar_prefetch = 0 : i64, scratch_operands = 0 : i64, tpu.core_type = #tpu.core_type<tc>, window_params = [{transform_indices = @transform_0, window_bounds = array<i64: 1, 8, 324>}, {pipeline_mode = #tpu.pipeline_mode<synchronous>, transform_indices = @transform_1, window_bounds = array<i64: 1, 286>}, {pipeline_mode = #tpu.pipeline_mode<synchronous>, transform_indices = @transform_2, window_bounds = array<i64: 4, 72>}, {pipeline_mode = #tpu.pipeline_mode<synchronous>, transform_indices = @transform_3, window_bounds = array<i64: 4, 1>}, {pipeline_mode = #tpu.pipeline_mode<synchronous>, transform_indices = @transform_4, window_bounds = array<i64: 4, 4>}, {pipeline_mode = #tpu.pipeline_mode<synchronous>, transform_indices = @transform_5, window_bounds = array<i64: 4, 1>}, {transform_indices = @transform_6, window_bounds = array<i64: 1, 4, 286>}]} {
    %c0 = arith.constant 0 : index
    %c0_0 = arith.constant 0 : index
    %0 = vector.load %arg2[%c0, %c0_0] : memref<1x286xf32, #tpu.memory_space<vmem>>, vector<1x286xf32>
    %c0_1 = arith.constant 0 : index
    %c0_2 = arith.constant 0 : index
    %1 = vector.load %arg3[%c0_1, %c0_2] : memref<4x72xf32, #tpu.memory_space<vmem>>, vector<4x72xf32>
    %c0_3 = arith.constant 0 : index
    %c0_4 = arith.constant 0 : index
    %2 = vector.load %arg4[%c0_3, %c0_4] : memref<4x1xf32, #tpu.memory_space<vmem>>, vector<4x1xf32>
    %c0_5 = arith.constant 0 : index
    %c0_6 = arith.constant 0 : index
    %3 = vector.load %arg5[%c0_5, %c0_6] : memref<4x4xf32, #tpu.memory_space<vmem>>, vector<4x4xf32>
    %c0_7 = arith.constant 0 : index
    %c0_8 = arith.constant 0 : index
    %4 = vector.load %arg6[%c0_7, %c0_8] : memref<4x1xf32, #tpu.memory_space<vmem>>, vector<4x1xf32>
    %c0_9 = arith.constant 0 : index
    %c0_10 = arith.constant 0 : index
    %c0_11 = arith.constant 0 : index
    %5 = vector.load %arg1[%c0_9, %c0_10, %c0_11] : memref<1x8x324xf32, #tpu.memory_space<vmem>>, vector<1x8x324xf32>
    %6 = vector.shape_cast %5 : vector<1x8x324xf32> to vector<8x324xf32>
    %7 = vector.extract_strided_slice %6 {offsets = [0, 19], sizes = [8, 286], strides = [1, 1]} : vector<8x324xf32> to vector<8x286xf32>
    %8 = vector.extract_strided_slice %6 {offsets = [0, 0], sizes = [8, 286], strides = [1, 1]} : vector<8x324xf32> to vector<8x286xf32>
    %9 = vector.extract_strided_slice %1 {offsets = [0, 0], sizes = [4, 8], strides = [1, 1]} : vector<4x72xf32> to vector<4x8xf32>
    %cst = arith.constant dense<0.000000e+00> : vector<4x286xf32>
    %10 = tpu.matmul %9, %8, %cst {dimension_numbers = #tpu.dot_dimension_numbers<[1], [0], [0], [1], [0, 0, 1, 1], [], []>} : vector<4x8xf32>, vector<8x286xf32>, vector<4x286xf32> -> vector<4x286xf32>
    %11 = vector.extract_strided_slice %6 {offsets = [0, 1], sizes = [8, 286], strides = [1, 1]} : vector<8x324xf32> to vector<8x286xf32>
    %12 = vector.extract_strided_slice %1 {offsets = [0, 8], sizes = [4, 8], strides = [1, 1]} : vector<4x72xf32> to vector<4x8xf32>
    %cst_12 = arith.constant dense<0.000000e+00> : vector<4x286xf32>
    %13 = tpu.matmul %12, %11, %cst_12 {dimension_numbers = #tpu.dot_dimension_numbers<[1], [0], [0], [1], [0, 0, 1, 1], [], []>} : vector<4x8xf32>, vector<8x286xf32>, vector<4x286xf32> -> vector<4x286xf32>
    %14 = arith.addf %10, %13 : vector<4x286xf32>
    %15 = vector.extract_strided_slice %6 {offsets = [0, 2], sizes = [8, 286], strides = [1, 1]} : vector<8x324xf32> to vector<8x286xf32>
    %16 = vector.extract_strided_slice %1 {offsets = [0, 16], sizes = [4, 8], strides = [1, 1]} : vector<4x72xf32> to vector<4x8xf32>
    %cst_13 = arith.constant dense<0.000000e+00> : vector<4x286xf32>
    %17 = tpu.matmul %16, %15, %cst_13 {dimension_numbers = #tpu.dot_dimension_numbers<[1], [0], [0], [1], [0, 0, 1, 1], [], []>} : vector<4x8xf32>, vector<8x286xf32>, vector<4x286xf32> -> vector<4x286xf32>
    %18 = arith.addf %14, %17 : vector<4x286xf32>
    %19 = vector.extract_strided_slice %6 {offsets = [0, 18], sizes = [8, 286], strides = [1, 1]} : vector<8x324xf32> to vector<8x286xf32>
    %20 = vector.extract_strided_slice %1 {offsets = [0, 24], sizes = [4, 8], strides = [1, 1]} : vector<4x72xf32> to vector<4x8xf32>
    %cst_14 = arith.constant dense<0.000000e+00> : vector<4x286xf32>
    %21 = tpu.matmul %20, %19, %cst_14 {dimension_numbers = #tpu.dot_dimension_numbers<[1], [0], [0], [1], [0, 0, 1, 1], [], []>} : vector<4x8xf32>, vector<8x286xf32>, vector<4x286xf32> -> vector<4x286xf32>
    %22 = arith.addf %18, %21 : vector<4x286xf32>
    %23 = vector.extract_strided_slice %1 {offsets = [0, 32], sizes = [4, 8], strides = [1, 1]} : vector<4x72xf32> to vector<4x8xf32>
    %cst_15 = arith.constant dense<0.000000e+00> : vector<4x286xf32>
    %24 = tpu.matmul %23, %7, %cst_15 {dimension_numbers = #tpu.dot_dimension_numbers<[1], [0], [0], [1], [0, 0, 1, 1], [], []>} : vector<4x8xf32>, vector<8x286xf32>, vector<4x286xf32> -> vector<4x286xf32>
    %25 = arith.addf %22, %24 : vector<4x286xf32>
    %26 = vector.extract_strided_slice %6 {offsets = [0, 20], sizes = [8, 286], strides = [1, 1]} : vector<8x324xf32> to vector<8x286xf32>
    %27 = vector.extract_strided_slice %1 {offsets = [0, 40], sizes = [4, 8], strides = [1, 1]} : vector<4x72xf32> to vector<4x8xf32>
    %cst_16 = arith.constant dense<0.000000e+00> : vector<4x286xf32>
    %28 = tpu.matmul %27, %26, %cst_16 {dimension_numbers = #tpu.dot_dimension_numbers<[1], [0], [0], [1], [0, 0, 1, 1], [], []>} : vector<4x8xf32>, vector<8x286xf32>, vector<4x286xf32> -> vector<4x286xf32>
    %29 = arith.addf %25, %28 : vector<4x286xf32>
    %30 = vector.extract_strided_slice %6 {offsets = [0, 36], sizes = [8, 286], strides = [1, 1]} : vector<8x324xf32> to vector<8x286xf32>
    %31 = vector.extract_strided_slice %1 {offsets = [0, 48], sizes = [4, 8], strides = [1, 1]} : vector<4x72xf32> to vector<4x8xf32>
    %cst_17 = arith.constant dense<0.000000e+00> : vector<4x286xf32>
    %32 = tpu.matmul %31, %30, %cst_17 {dimension_numbers = #tpu.dot_dimension_numbers<[1], [0], [0], [1], [0, 0, 1, 1], [], []>} : vector<4x8xf32>, vector<8x286xf32>, vector<4x286xf32> -> vector<4x286xf32>
    %33 = arith.addf %29, %32 : vector<4x286xf32>
    %34 = vector.extract_strided_slice %6 {offsets = [0, 37], sizes = [8, 286], strides = [1, 1]} : vector<8x324xf32> to vector<8x286xf32>
    %35 = vector.extract_strided_slice %1 {offsets = [0, 56], sizes = [4, 8], strides = [1, 1]} : vector<4x72xf32> to vector<4x8xf32>
    %cst_18 = arith.constant dense<0.000000e+00> : vector<4x286xf32>
    %36 = tpu.matmul %35, %34, %cst_18 {dimension_numbers = #tpu.dot_dimension_numbers<[1], [0], [0], [1], [0, 0, 1, 1], [], []>} : vector<4x8xf32>, vector<8x286xf32>, vector<4x286xf32> -> vector<4x286xf32>
    %37 = arith.addf %33, %36 : vector<4x286xf32>
    %38 = vector.extract_strided_slice %6 {offsets = [0, 38], sizes = [8, 286], strides = [1, 1]} : vector<8x324xf32> to vector<8x286xf32>
    %39 = vector.extract_strided_slice %1 {offsets = [0, 64], sizes = [4, 8], strides = [1, 1]} : vector<4x72xf32> to vector<4x8xf32>
    %cst_19 = arith.constant dense<0.000000e+00> : vector<4x286xf32>
    %40 = tpu.matmul %39, %38, %cst_19 {dimension_numbers = #tpu.dot_dimension_numbers<[1], [0], [0], [1], [0, 0, 1, 1], [], []>} : vector<4x8xf32>, vector<8x286xf32>, vector<4x286xf32> -> vector<4x286xf32>
    %41 = arith.addf %37, %40 : vector<4x286xf32>
    %42 = vector.broadcast %2 : vector<4x1xf32> to vector<4x286xf32>
    %43 = arith.addf %41, %42 : vector<4x286xf32>
    %cst_20 = arith.constant 2.000000e-01 : f32
    %44 = vector.broadcast %cst_20 : f32 to vector<4x286xf32>
    %45 = arith.mulf %44, %43 : vector<4x286xf32>
    %46 = arith.maximumf %43, %45 : vector<4x286xf32>
    %47 = vector.broadcast %0 : vector<1x286xf32> to vector<4x286xf32>
    %48 = arith.mulf %46, %47 : vector<4x286xf32>
    %cst_21 = arith.constant dense<0.000000e+00> : vector<4xf32>
    %49 = vector.multi_reduction <add>, %48, %cst_21 [1] : vector<4x286xf32> to vector<4xf32>
    %50 = vector.shape_cast %49 : vector<4xf32> to vector<4x1xf32>
    %51 = arith.mulf %48, %46 : vector<4x286xf32>
    %cst_22 = arith.constant dense<0.000000e+00> : vector<4xf32>
    %52 = vector.multi_reduction <add>, %51, %cst_22 [1] : vector<4x286xf32> to vector<4xf32>
    %53 = vector.shape_cast %52 : vector<4xf32> to vector<4x1xf32>
    %cst_23 = arith.constant 3.906250e-03 : f32
    %54 = vector.broadcast %cst_23 : f32 to vector<4x1xf32>
    %55 = arith.mulf %50, %54 : vector<4x1xf32>
    %cst_24 = arith.constant 3.906250e-03 : f32
    %56 = vector.broadcast %cst_24 : f32 to vector<4x1xf32>
    %57 = arith.mulf %53, %56 : vector<4x1xf32>
    %58 = arith.mulf %55, %55 : vector<4x1xf32>
    %59 = arith.subf %57, %58 : vector<4x1xf32>
    %cst_25 = arith.constant 0.000000e+00 : f32
    %60 = vector.broadcast %cst_25 : f32 to vector<4x1xf32>
    %61 = arith.maximumf %59, %60 : vector<4x1xf32>
    %62 = vector.broadcast %55 : vector<4x1xf32> to vector<4x286xf32>
    %63 = arith.subf %46, %62 : vector<4x286xf32>
    %cst_26 = arith.constant 9.99999993E-9 : f32
    %64 = vector.broadcast %cst_26 : f32 to vector<4x1xf32>
    %65 = arith.addf %61, %64 : vector<4x1xf32>
    %66 = math.rsqrt %65 : vector<4x1xf32>
    %67 = vector.broadcast %66 : vector<4x1xf32> to vector<4x286xf32>
    %68 = arith.mulf %63, %67 : vector<4x286xf32>
    %cst_27 = arith.constant dense<0.000000e+00> : vector<4x286xf32>
    %69 = tpu.matmul %3, %68, %cst_27 {dimension_numbers = #tpu.dot_dimension_numbers<[1], [0], [0], [1], [0, 0, 1, 1], [], []>} : vector<4x4xf32>, vector<4x286xf32>, vector<4x286xf32> -> vector<4x286xf32>
    %70 = vector.broadcast %4 : vector<4x1xf32> to vector<4x286xf32>
    %71 = arith.addf %69, %70 : vector<4x286xf32>
    %72 = arith.negf %71 : vector<4x286xf32>
    %73 = math.exp %72 : vector<4x286xf32>
    %cst_28 = arith.constant 1.000000e+00 : f32
    %74 = vector.broadcast %cst_28 : f32 to vector<4x286xf32>
    %75 = arith.addf %74, %73 : vector<4x286xf32>
    %76 = arith.divf %74, %75 : vector<4x286xf32>
    %77 = vector.extract_strided_slice %7 {offsets = [0, 0], sizes = [4, 286], strides = [1, 1]} : vector<8x286xf32> to vector<4x286xf32>
    %78 = vector.extract_strided_slice %7 {offsets = [4, 0], sizes = [4, 286], strides = [1, 1]} : vector<8x286xf32> to vector<4x286xf32>
    %79 = arith.addf %77, %78 : vector<4x286xf32>
    %cst_29 = arith.constant 5.000000e-01 : f32
    %80 = vector.broadcast %cst_29 : f32 to vector<4x286xf32>
    %81 = arith.mulf %80, %79 : vector<4x286xf32>
    %cst_30 = arith.constant 5.000000e-01 : f32
    %82 = vector.broadcast %cst_30 : f32 to vector<4x286xf32>
    %83 = arith.mulf %82, %76 : vector<4x286xf32>
    %84 = arith.subf %77, %78 : vector<4x286xf32>
    %85 = arith.mulf %83, %84 : vector<4x286xf32>
    %86 = arith.addf %81, %85 : vector<4x286xf32>
    %c0_31 = arith.constant 0 : index
    %c0_32 = arith.constant 0 : index
    %c0_33 = arith.constant 0 : index
    %87 = vector.load %arg7[%c0_31, %c0_32, %c0_33] : memref<1x4x286xf32, #tpu.memory_space<vmem>>, vector<1x4x286xf32>
    %88 = vector.shape_cast %87 : vector<1x4x286xf32> to vector<4x286xf32>
    %89 = vector.shape_cast %86 : vector<4x286xf32> to vector<1x4x286xf32>
    tpu.vector_store %arg7[%c0_31, %c0_32, %c0_33], %89 {strides = array<i32>} : memref<1x4x286xf32, #tpu.memory_space<vmem>>, vector<1x4x286xf32>,
    return
  }
  func.func @transform_0(%arg0: i32) -> (i32, i32, i32) {
    %c0_i32 = arith.constant 0 : i32
    %c0_i32_0 = arith.constant 0 : i32
    %c0_i32_1 = arith.constant 0 : i32
    return %arg0, %c0_i32, %c0_i32_0 : i32, i32, i32
  }
  func.func @transform_1(%arg0: i32) -> (i32, i32) {
    %c0_i32 = arith.constant 0 : i32
    %c0_i32_0 = arith.constant 0 : i32
    %c0_i32_1 = arith.constant 0 : i32
    return %c0_i32, %c0_i32_0 : i32, i32
  }
  func.func @transform_2(%arg0: i32) -> (i32, i32) {
    %c0_i32 = arith.constant 0 : i32
    %c0_i32_0 = arith.constant 0 : i32
    %c0_i32_1 = arith.constant 0 : i32
    return %c0_i32, %c0_i32_0 : i32, i32
  }
  func.func @transform_3(%arg0: i32) -> (i32, i32) {
    %c0_i32 = arith.constant 0 : i32
    %c0_i32_0 = arith.constant 0 : i32
    %c0_i32_1 = arith.constant 0 : i32
    return %c0_i32, %c0_i32_0 : i32, i32
  }
  func.func @transform_4(%arg0: i32) -> (i32, i32) {
    %c0_i32 = arith.constant 0 : i32
    %c0_i32_0 = arith.constant 0 : i32
    %c0_i32_1 = arith.constant 0 : i32
    return %c0_i32, %c0_i32_0 : i32, i32
  }
  func.func @transform_5(%arg0: i32) -> (i32, i32) {
    %c0_i32 = arith.constant 0 : i32
    %c0_i32_0 = arith.constant 0 : i32
    %c0_i32_1 = arith.constant 0 : i32
    return %c0_i32, %c0_i32_0 : i32, i32
  }
  func.func @transform_6(%arg0: i32) -> (i32, i32, i32) {
    %c0_i32 = arith.constant 0 : i32
    %c0_i32_0 = arith.constant 0 : i32
    %c0_i32_1 = arith.constant 0 : i32
    return %arg0, %c0_i32, %c0_i32_0 : i32, i32, i32
  }
}

</mosaic_0001>

<llo_original>
// kernel: affa_forward.1
$region0: #{affa_forward.1}
  #allocation0 [shape = 'u32[]', space=smem, size = 0x4, offset = 0x4, fixed_abs, tag = 'smem constant byte address 0x4 - core index']
  #allocation1 [shape = 'u32[72,128]{1,0:T(1,128)}', space=vmem, size = 0x9000, scoped, tag = 'internal scratch']
  %s0 = inlined_call_operand.vmem [shape: f32[2,8,324], index: 0, kind: input, shape index: {}]
  %s1 = inlined_call_operand.vmem [shape: f32[1,286], index: 1, kind: input, shape index: {}]
  %s2 = inlined_call_operand.vmem [shape: f32[4,72], index: 2, kind: input, shape index: {}]
  %s3 = inlined_call_operand.vmem [shape: f32[4,1], index: 3, kind: input, shape index: {}]
  %s4 = inlined_call_operand.vmem [shape: f32[4,4], index: 4, kind: input, shape index: {}]
  %s5 = inlined_call_operand.vmem [shape: f32[4,1], index: 5, kind: input, shape index: {}]
  %s6 = inlined_call_operand.vmem [shape: f32[2,4,286], index: 6, kind: output, shape index: {}]
  %s7 = sld [smem:[#allocation0]]
  $region57: #{affa_forward.1} parent=0
    _
  %s9 = ssub.s32 1, %s7
  %s10 = scalar_select 0, %s9, %s7
  loop: start=0, step=1, limit=4
  $region2: #{affa_forward.1} parent=0 // loop_pre_header
    _
  $region3: #{affa_forward.1} parent=0 // loop_header
    %s12 = sphi 0, %s16
    %p13 = scmp.ge.s32.totalorder %s12, 4
    %s22 = sphi 0, %s24
    %s25 = sphi 0, %s22
    %s26 = sphi 0, %s25
    %s42 = sphi 0, %s26
    %s46 = sphi 0, %s46
    %s48 = sphi 0, %s46
    %s49 = sphi 0, %s48
    %s63 = sphi 0, %s49
    %s67 = sphi 0, %s67
    %s69 = sphi 0, %s67
    %s70 = sphi 0, %s69
    %s84 = sphi 0, %s70
    %s88 = sphi 0, %s88
    %s90 = sphi 0, %s88
    %s91 = sphi 0, %s90
    %s105 = sphi 0, %s91
    %s109 = sphi 0, %s109
    %s111 = sphi 0, %s109
    %s112 = sphi 0, %s111
    %s126 = sphi 0, %s112
    %s130 = sphi 0, %s130
    %s132 = sphi 0, %s130
    %s133 = sphi 0, %s132
    %s147 = sphi 0, %s133
    %s153 = sphi 0, %s155
    %s156 = sphi 0, %s153
    %s157 = sphi 0, %s156
    %s173 = sphi 0, %s157
  $region4: #{affa_forward.1} parent=0 // loop_header_branch
    %15 = sbr.rel (%p13) target = $region8
  $region5: #{affa_forward.1} parent=0 // loop_body
    %s17 = ssub.s32 %s12, 1
    %s18 = ssub.s32 %s12, 2
    %s19 = sadd.s32 %s12, 1
    %s20 = ssub.s32 %s12, %s19
    %p21 = scmp.eq.s32.totalorder %s20, 0
    %s23 = sadd.s32 %s22, 1
    %s24 = scalar_select %p21, %s22, %s23
    %p27 = pneg %p21
    %p28 = scmp.eq.s32.totalorder %s12, 1
    %p29 = por %p27, %p28
    %p30 = scmp.ne.s32.totalorder %s22, %s25
    %p31 = scmp.eq.s32.totalorder %s12, 0
    %p32 = por %p30, %p31
    %p33 = scmp.ne.s32.totalorder %s22, %s25
    %p34 = scmp.eq.s32.totalorder %s17, 1
    %p35 = por %p33, %p34
    %p36 = scmp.ne.s32.totalorder %s25, %s26
    %p37 = scmp.eq.s32.totalorder %s17, 0
    %p38 = por %p36, %p37
    %p39 = scmp.ne.s32.totalorder %s25, %s26
    %p40 = scmp.eq.s32.totalorder %s18, 1
    %p41 = por %p39, %p40
    %p43 = scmp.ne.s32.totalorder %s26, %s42
    %p44 = scmp.eq.s32.totalorder %s18, 0
    %p45 = por %p43, %p44
    %s47 = sadd.s32 %s46, 1
    %p50 = scmp.eq.s32.totalorder %s12, 1
    %p51 = scmp.ne.s32.totalorder %s46, %s48
    %p52 = scmp.eq.s32.totalorder %s12, 0
    %p53 = por %p51, %p52
    %p54 = scmp.ne.s32.totalorder %s46, %s48
    %p55 = scmp.eq.s32.totalorder %s17, 1
    %p56 = por %p54, %p55
    %p57 = scmp.ne.s32.totalorder %s48, %s49
    %p58 = scmp.eq.s32.totalorder %s17, 0
    %p59 = por %p57, %p58
    %p60 = scmp.ne.s32.totalorder %s48, %s49
    %p61 = scmp.eq.s32.totalorder %s18, 1
    %p62 = por %p60, %p61
    %p64 = scmp.ne.s32.totalorder %s49, %s63
    %p65 = scmp.eq.s32.totalorder %s18, 0
    %p66 = por %p64, %p65
    %s68 = sadd.s32 %s67, 1
    %p71 = scmp.eq.s32.totalorder %s12, 1
    %p72 = scmp.ne.s32.totalorder %s67, %s69
    %p73 = scmp.eq.s32.totalorder %s12, 0
    %p74 = por %p72, %p73
    %p75 = scmp.ne.s32.totalorder %s67, %s69
    %p76 = scmp.eq.s32.totalorder %s17, 1
    %p77 = por %p75, %p76
    %p78 = scmp.ne.s32.totalorder %s69, %s70
    %p79 = scmp.eq.s32.totalorder %s17, 0
    %p80 = por %p78, %p79
    %p81 = scmp.ne.s32.totalorder %s69, %s70
    %p82 = scmp.eq.s32.totalorder %s18, 1
    %p83 = por %p81, %p82
    %p85 = scmp.ne.s32.totalorder %s70, %s84
    %p86 = scmp.eq.s32.totalorder %s18, 0
    %p87 = por %p85, %p86
    %s89 = sadd.s32 %s88, 1
    %p92 = scmp.eq.s32.totalorder %s12, 1
    %p93 = scmp.ne.s32.totalorder %s88, %s90
    %p94 = scmp.eq.s32.totalorder %s12, 0
    %p95 = por %p93, %p94
    %p96 = scmp.ne.s32.totalorder %s88, %s90
    %p97 = scmp.eq.s32.totalorder %s17, 1
    %p98 = por %p96, %p97
    %p99 = scmp.ne.s32.totalorder %s90, %s91
    %p100 = scmp.eq.s32.totalorder %s17, 0
    %p101 = por %p99, %p100
    %p102 = scmp.ne.s32.totalorder %s90, %s91
    %p103 = scmp.eq.s32.totalorder %s18, 1
    %p104 = por %p102, %p103
    %p106 = scmp.ne.s32.totalorder %s91, %s105
    %p107 = scmp.eq.s32.totalorder %s18, 0
    %p108 = por %p106, %p107
    %s110 = sadd.s32 %s109, 1
    %p113 = scmp.eq.s32.totalorder %s12, 1
    %p114 = scmp.ne.s32.totalorder %s109, %s111
    %p115 = scmp.eq.s32.totalorder %s12, 0
    %p116 = por %p114, %p115
    %p117 = scmp.ne.s32.totalorder %s109, %s111
    %p118 = scmp.eq.s32.totalorder %s17, 1
    %p119 = por %p117, %p118
    %p120 = scmp.ne.s32.totalorder %s111, %s112
    %p121 = scmp.eq.s32.totalorder %s17, 0
    %p122 = por %p120, %p121
    %p123 = scmp.ne.s32.totalorder %s111, %s112
    %p124 = scmp.eq.s32.totalorder %s18, 1
    %p125 = por %p123, %p124
    %p127 = scmp.ne.s32.totalorder %s112, %s126
    %p128 = scmp.eq.s32.totalorder %s18, 0
    %p129 = por %p127, %p128
    %s131 = sadd.s32 %s130, 1
    %p134 = scmp.eq.s32.totalorder %s12, 1
    %p135 = scmp.ne.s32.totalorder %s130, %s132
    %p136 = scmp.eq.s32.totalorder %s12, 0
    %p137 = por %p135, %p136
    %p138 = scmp.ne.s32.totalorder %s130, %s132
    %p139 = scmp.eq.s32.totalorder %s17, 1
    %p140 = por %p138, %p139
    %p141 = scmp.ne.s32.totalorder %s132, %s133
    %p142 = scmp.eq.s32.totalorder %s17, 0
    %p143 = por %p141, %p142
    %p144 = scmp.ne.s32.totalorder %s132, %s133
    %p145 = scmp.eq.s32.totalorder %s18, 1
    %p146 = por %p144, %p145
    %p148 = scmp.ne.s32.totalorder %s133, %s147
    %p149 = scmp.eq.s32.totalorder %s18, 0
    %p150 = por %p148, %p149
    %s151 = ssub.s32 %s12, %s19
    %p152 = scmp.eq.s32.totalorder %s151, 0
    %s154 = sadd.s32 %s153, 1
    %s155 = scalar_select %p152, %s153, %s154
    %p158 = pneg %p152
    %p159 = scmp.eq.s32.totalorder %s12, 1
    %p160 = por %p158, %p159
    %p161 = scmp.ne.s32.totalorder %s153, %s156
    %p162 = scmp.eq.s32.totalorder %s12, 0
    %p163 = por %p161, %p162
    %p164 = scmp.ne.s32.totalorder %s153, %s156
    %p165 = scmp.eq.s32.totalorder %s17, 1
    %p166 = por %p164, %p165
    %p167 = scmp.ne.s32.totalorder %s156, %s157
    %p168 = scmp.eq.s32.totalorder %s17, 0
    %p169 = por %p167, %p168
    %p170 = scmp.ne.s32.totalorder %s156, %s157
    %p171 = scmp.eq.s32.totalorder %s18, 1
    %p172 = por %p170, %p171
    %p174 = scmp.ne.s32.totalorder %s157, %s173
    %p175 = scmp.eq.s32.totalorder %s18, 0
    %p176 = por %p174, %p175
    %p177 = scmp.le.s32.totalorder 1, %s12
    %p178 = scmp.lt.s32.totalorder %s12, 3
    %p179 = pnand %p177, %p178
    %p180 = pneg %p179
    // Predicated region
    $region9: #{affa_forward.1} parent=5 // pred_check
      _
    $region10: #{affa_forward.1} parent=5 // pred_check_branch
      %182 = sbr.rel (%p179) target = $region12
    $region11: #{affa_forward.1} parent=5 // pred_region
      %s183 = ssub.s32 %s12, 1
      // Predicated region
      $region13: #{affa_forward.1} parent=11 // pred_check
        %p184 = pneg %p59
      $region14: #{affa_forward.1} parent=11 // pred_check_branch
        %186 = sbr.rel (%p184) target = $region16
      $region15: #{affa_forward.1} parent=11 // pred_region
        _
      $region16: #{affa_forward.1} parent=11 // pred_fallthru
        _
      // Predicated region
      $region17: #{affa_forward.1} parent=11 // pred_check
        %p187 = pneg %p80
      $region18: #{affa_forward.1} parent=11 // pred_check_branch
        %189 = sbr.rel (%p187) target = $region20
      $region19: #{affa_forward.1} parent=11 // pred_region
        _
      $region20: #{affa_forward.1} parent=11 // pred_fallthru
        _
      // Predicated region
      $region21: #{affa_forward.1} parent=11 // pred_check
        %p190 = pneg %p101
      $region22: #{affa_forward.1} parent=11 // pred_check_branch
        %192 = sbr.rel (%p190) target = $region24
      $region23: #{affa_forward.1} parent=11 // pred_region
        _
      $region24: #{affa_forward.1} parent=11 // pred_fallthru
        _
      // Predicated region
      $region25: #{affa_forward.1} parent=11 // pred_check
        %p193 = pneg %p122
      $region26: #{affa_forward.1} parent=11 // pred_check_branch
        %195 = sbr.rel (%p193) target = $region28
      $region27: #{affa_forward.1} parent=11 // pred_region
        _
      $region28: #{affa_forward.1} parent=11 // pred_fallthru
        _
      // Predicated region
      $region29: #{affa_forward.1} parent=11 // pred_check
        %p196 = pneg %p143
      $region30: #{affa_forward.1} parent=11 // pred_check_branch
        %198 = sbr.rel (%p196) target = $region32
      $region31: #{affa_forward.1} parent=11 // pred_region
        _
      $region32: #{affa_forward.1} parent=11 // pred_fallthru
        _
    $region12: #{affa_forward.1} parent=5 // pred_fallthru
      _
    %p199 = scmp.lt.s32.totalorder %s12, 2
    // Predicated region
    $region33: #{affa_forward.1} parent=5 // pred_check
      %p200 = pneg %p199
    $region34: #{affa_forward.1} parent=5 // pred_check_branch
      %202 = sbr.rel (%p200) target = $region36
    $region35: #{affa_forward.1} parent=5 // pred_region
      // Predicated region
      $region37: #{affa_forward.1} parent=35 // pred_check
        %p203 = pneg %p32
      $region38: #{affa_forward.1} parent=35 // pred_check_branch
        %205 = sbr.rel (%p203) target = $region40
      $region39: #{affa_forward.1} parent=35 // pred_region
        %p206 = scmp.lt.s32.totalorder %s12, 1
        %s207 = scalar_select %p206, %s12, 1
        %s208 = smul.addr %s207, 3
        %s209 = smul.addr %s208, 8
        %s210 = scalar_lea.vmem %s0, %s209
      $region40: #{affa_forward.1} parent=35 // pred_fallthru
        _
    $region36: #{affa_forward.1} parent=5 // pred_fallthru
      _
    %p211 = scmp.le.s32.totalorder 1, %s12
    %p212 = scmp.lt.s32.totalorder %s12, 3
    %p213 = pnand %p211, %p212
    %p214 = pneg %p213
    // Predicated region
    $region41: #{affa_forward.1} parent=5 // pred_check
      _
    $region42: #{affa_forward.1} parent=5 // pred_check_branch
      %216 = sbr.rel (%p213) target = $region44
    $region43: #{affa_forward.1} parent=5 // pred_region
      %s217 = ssub.s32 %s12, 1
      %p218 = scmp.lt.s32.totalorder %s17, 1
      %s219 = scalar_select %p218, %s17, 1
      %s220 = smul.addr %s219, 3
      %s221 = smul.addr %s220, 8
      %s222 = scalar_lea.vmem %s0, %s221
      %p223 = pneg %p38
      %p224 = pneg %p35
      %p225 = pneg %p59
      %p226 = pneg %p56
      %p227 = pneg %p80
      %p228 = pneg %p77
      %p229 = pneg %p101
      %p230 = pneg %p98
      %p231 = pneg %p122
      %p232 = pneg %p119
      %p233 = pneg %p143
      %p234 = pneg %p140
      %p235 = pneg %p169
      %p236 = pneg %p166
      %p237 = scmp.lt.s32.totalorder %s17, 1
      %s238 = scalar_select %p237, %s17, 1
      %s239 = smul.addr %s238, 3
      %s240 = smul.addr %s239, 4
      %s241 = scalar_lea.vmem %s6, %s240
      %p242 = scmp.lt.s32.totalorder %s17, 1
      %s243 = scalar_select %p242, %s17, 1
      %s244 = smul.addr %s243, 3
      %s245 = smul.addr %s244, 8
      %s246 = scalar_lea.vmem %s0, %s245
      %p247 = scmp.lt.s32.totalorder %s17, 1
      %s248 = scalar_select %p247, %s17, 1
      %s249 = smul.addr %s248, 3
      %s250 = smul.addr %s249, 4
      %s251 = scalar_lea.vmem %s6, %s250
      %v252 = vld [vmem:[%s1] sm:$0x7]
      %v253 = vld [vmem:[%s2] sm:$0xf]
      %v254 = vld [vmem:[%s3] sm:$0xf]
      %v255 = vld [vmem:[%s4] sm:$0xf]
      %v256 = vld [vmem:[%s5] sm:$0xf]
      %v257 = vld [vmem:[%s246] sm:$0xff]
      %v258 = vld [vmem:[%s246 + $0x8] sm:$0xff]
      %v259 = vld [vmem:[%s246 + $0x10] sm:$0xff]
      %261 = vrot.lane.b32.xlu0 %v253, 120
      %v262 = vpop.permute.xlu0 %261
      %266 = vrot.lane.b32.xlu0 %v257, 127
      %v267 = vpop.permute.xlu0 %266
      %268 = vrot.lane.b32.xlu0 %v258, 127
      %v269 = vpop.permute.xlu0 %268
      %270 = vrot.lane.b32.xlu0 %v259, 127
      %v271 = vpop.permute.xlu0 %270
      %vm272 = vcmask 1039360
      %v273 = vsel %vm272, %v267, %v269
      %v274 = vsel %vm272, %v269, %v271
      %vm278 = vcmask 64512
      %v279 = vsel %vm278, %v262, 0
      %281 = vmatpush.msra.mxu0 0.0
      %282 = vmatpush.msra.mxu0 0.0
      %283 = vmatpush.msra.mxu0 0.0
      %284 = vmatpush.msra.mxu0 0.0
      %285 = vmatpush.msra.mxu0 0.0
      %286 = vmatpush.msra.mxu0 0.0
      %287 = vmatpush.msra.mxu0 0.0
      %288 = vmatpush.msra.mxu0 0.0
      %289 = vmatpush.msra.mxu0 0.0
      %290 = vmatpush.msra.mxu0 0.0
      %291 = vmatpush.msra.mxu0 0.0
      %292 = vmatpush.msra.mxu0 0.0
      %293 = vmatpush.msra.mxu0 0.0
      %294 = vmatpush.msra.mxu0 0.0
      %295 = vmatpush.msra.mxu0 0.0
      %296 = vmatpush.msra.mxu0 %v273
      %297 = vmatmul.f32.gmra.mxu0 %v279
      %v298 = vpop.f32.mrf.mxu0
      %v299 = vadd.f32 0.0, %v298
      %300 = vdwg.mxu0
      %301 = vmatpush.msra.mxu0 0.0
      %302 = vmatpush.msra.mxu0 0.0
      %303 = vmatpush.msra.mxu0 0.0
      %304 = vmatpush.msra.mxu0 0.0
      %305 = vmatpush.msra.mxu0 0.0
      %306 = vmatpush.msra.mxu0 0.0
      %307 = vmatpush.msra.mxu0 0.0
      %308 = vmatpush.msra.mxu0 0.0
      %309 = vmatpush.msra.mxu0 0.0
      %310 = vmatpush.msra.mxu0 0.0
      %311 = vmatpush.msra.mxu0 0.0
      %312 = vmatpush.msra.mxu0 0.0
      %313 = vmatpush.msra.mxu0 0.0
      %314 = vmatpush.msra.mxu0 0.0
      %315 = vmatpush.msra.mxu0 0.0
      %316 = vmatpush.msra.mxu0 %v274
      %317 = vmatmul.f32.gmra.mxu0 %v279
      %v318 = vpop.f32.mrf.mxu0
      %v319 = vadd.f32 0.0, %v318
      %320 = vdwg.mxu0
      %321 = vmatpush.msra.mxu0 0.0
      %322 = vmatpush.msra.mxu0 0.0
      %323 = vmatpush.msra.mxu0 0.0
      %324 = vmatpush.msra.mxu0 0.0
      %325 = vmatpush.msra.mxu0 0.0
      %326 = vmatpush.msra.mxu0 0.0
      %327 = vmatpush.msra.mxu0 0.0
      %328 = vmatpush.msra.mxu0 0.0
      %329 = vmatpush.msra.mxu0 0.0
      %330 = vmatpush.msra.mxu0 0.0
      %331 = vmatpush.msra.mxu0 0.0
      %332 = vmatpush.msra.mxu0 0.0
      %333 = vmatpush.msra.mxu0 0.0
      %334 = vmatpush.msra.mxu0 0.0
      %335 = vmatpush.msra.mxu0 0.0
      %336 = vmatpush.msra.mxu0 %v271
      %337 = vmatmul.f32.gmra.mxu0 %v279
      %v338 = vpop.f32.mrf.mxu0
      %v339 = vadd.f32 0.0, %v338
      %340 = vdwg.mxu0
      %v341 = vsel %vm278, %v253, 0
      %343 = vmatpush.msra.mxu0 0.0
      %344 = vmatpush.msra.mxu0 0.0
      %345 = vmatpush.msra.mxu0 0.0
      %346 = vmatpush.msra.mxu0 0.0
      %347 = vmatpush.msra.mxu0 0.0
      %348 = vmatpush.msra.mxu0 0.0
      %349 = vmatpush.msra.mxu0 0.0
      %350 = vmatpush.msra.mxu0 0.0
      %351 = vmatpush.msra.mxu0 0.0
      %352 = vmatpush.msra.mxu0 0.0
      %353 = vmatpush.msra.mxu0 0.0
      %354 = vmatpush.msra.mxu0 0.0
      %355 = vmatpush.msra.mxu0 0.0
      %356 = vmatpush.msra.mxu0 0.0
      %357 = vmatpush.msra.mxu0 0.0
      %358 = vmatpush.msra.mxu0 %v257
      %359 = vmatmul.f32.gmra.mxu0 %v341
      %v360 = vpop.f32.mrf.mxu0
      %v361 = vadd.f32 %v299, %v360
      %362 = vdwg.mxu0
      %363 = vmatpush.msra.mxu0 0.0
      %364 = vmatpush.msra.mxu0 0.0
      %365 = vmatpush.msra.mxu0 0.0
      %366 = vmatpush.msra.mxu0 0.0
      %367 = vmatpush.msra.mxu0 0.0
      %368 = vmatpush.msra.mxu0 0.0
      %369 = vmatpush.msra.mxu0 0.0
      %370 = vmatpush.msra.mxu0 0.0
      %371 = vmatpush.msra.mxu0 0.0
      %372 = vmatpush.msra.mxu0 0.0
      %373 = vmatpush.msra.mxu0 0.0
      %374 = vmatpush.msra.mxu0 0.0
      %375 = vmatpush.msra.mxu0 0.0
      %376 = vmatpush.msra.mxu0 0.0
      %377 = vmatpush.msra.mxu0 0.0
      %378 = vmatpush.msra.mxu0 %v258
      %379 = vmatmul.f32.gmra.mxu0 %v341
      %v380 = vpop.f32.mrf.mxu0
      %v381 = vadd.f32 %v319, %v380
      %382 = vdwg.mxu0
      %383 = vmatpush.msra.mxu0 0.0
      %384 = vmatpush.msra.mxu0 0.0
      %385 = vmatpush.msra.mxu0 0.0
      %386 = vmatpush.msra.mxu0 0.0
      %387 = vmatpush.msra.mxu0 0.0
      %388 = vmatpush.msra.mxu0 0.0
      %389 = vmatpush.msra.mxu0 0.0
      %390 = vmatpush.msra.mxu0 0.0
      %391 = vmatpush.msra.mxu0 0.0
      %392 = vmatpush.msra.mxu0 0.0
      %393 = vmatpush.msra.mxu0 0.0
      %394 = vmatpush.msra.mxu0 0.0
      %395 = vmatpush.msra.mxu0 0.0
      %396 = vmatpush.msra.mxu0 0.0
      %397 = vmatpush.msra.mxu0 0.0
      %398 = vmatpush.msra.mxu0 %v259
      %399 = vmatmul.f32.gmra.mxu0 %v341
      %v400 = vpop.f32.mrf.mxu0
      %v401 = vadd.f32 %v339, %v400
      %402 = vdwg.mxu0
      %403 = vrot.lane.b32.xlu0 %v253, 112
      %v404 = vpop.permute.xlu0 %403
      %405 = vrot.lane.b32.xlu0 %v257, 126
      %v406 = vpop.permute.xlu0 %405
      %407 = vrot.lane.b32.xlu0 %v258, 126
      %v408 = vpop.permute.xlu0 %407
      %409 = vrot.lane.b32.xlu0 %v259, 126
      %v410 = vpop.permute.xlu0 %409
      %vm411 = vcmask 1031168
      %v412 = vsel %vm411, %v406, %v408
      %v413 = vsel %vm411, %v408, %v410
      %v417 = vsel %vm278, %v404, 0
      %419 = vmatpush.msra.mxu0 0.0
      %420 = vmatpush.msra.mxu0 0.0
      %421 = vmatpush.msra.mxu0 0.0
      %422 = vmatpush.msra.mxu0 0.0
      %423 = vmatpush.msra.mxu0 0.0
      %424 = vmatpush.msra.mxu0 0.0
      %425 = vmatpush.msra.mxu0 0.0
      %426 = vmatpush.msra.mxu0 0.0
      %427 = vmatpush.msra.mxu0 0.0
      %428 = vmatpush.msra.mxu0 0.0
      %429 = vmatpush.msra.mxu0 0.0
      %430 = vmatpush.msra.mxu0 0.0
      %431 = vmatpush.msra.mxu0 0.0
      %432 = vmatpush.msra.mxu0 0.0
      %433 = vmatpush.msra.mxu0 0.0
      %434 = vmatpush.msra.mxu0 %v412
      %435 = vmatmul.f32.gmra.mxu0 %v417
      %v436 = vpop.f32.mrf.mxu0
      %v437 = vadd.f32 0.0, %v436
      %438 = vdwg.mxu0
      %439 = vmatpush.msra.mxu0 0.0
      %440 = vmatpush.msra.mxu0 0.0
      %441 = vmatpush.msra.mxu0 0.0
      %442 = vmatpush.msra.mxu0 0.0
      %443 = vmatpush.msra.mxu0 0.0
      %444 = vmatpush.msra.mxu0 0.0
      %445 = vmatpush.msra.mxu0 0.0
      %446 = vmatpush.msra.mxu0 0.0
      %447 = vmatpush.msra.mxu0 0.0
      %448 = vmatpush.msra.mxu0 0.0
      %449 = vmatpush.msra.mxu0 0.0
      %450 = vmatpush.msra.mxu0 0.0
      %451 = vmatpush.msra.mxu0 0.0
      %452 = vmatpush.msra.mxu0 0.0
      %453 = vmatpush.msra.mxu0 0.0
      %454 = vmatpush.msra.mxu0 %v413
      %455 = vmatmul.f32.gmra.mxu0 %v417
      %v456 = vpop.f32.mrf.mxu0
      %v457 = vadd.f32 0.0, %v456
      %458 = vdwg.mxu0
      %459 = vmatpush.msra.mxu0 0.0
      %460 = vmatpush.msra.mxu0 0.0
      %461 = vmatpush.msra.mxu0 0.0
      %462 = vmatpush.msra.mxu0 0.0
      %463 = vmatpush.msra.mxu0 0.0
      %464 = vmatpush.msra.mxu0 0.0
      %465 = vmatpush.msra.mxu0 0.0
      %466 = vmatpush.msra.mxu0 0.0
      %467 = vmatpush.msra.mxu0 0.0
      %468 = vmatpush.msra.mxu0 0.0
      %469 = vmatpush.msra.mxu0 0.0
      %470 = vmatpush.msra.mxu0 0.0
      %471 = vmatpush.msra.mxu0 0.0
      %472 = vmatpush.msra.mxu0 0.0
      %473 = vmatpush.msra.mxu0 0.0
      %474 = vmatpush.msra.mxu0 %v410
      %475 = vmatmul.f32.gmra.mxu0 %v417
      %v476 = vpop.f32.mrf.mxu0
      %v477 = vadd.f32 0.0, %v476
      %478 = vdwg.mxu0
      %v479 = vadd.f32 %v361, %v437
      %v480 = vadd.f32 %v381, %v457
      %v481 = vadd.f32 %v401, %v477
      %482 = vrot.lane.b32.xlu0 %v253, 104
      %v483 = vpop.permute.xlu0 %482
      %484 = vrot.lane.b32.xlu0 %v257, 110
      %v485 = vpop.permute.xlu0 %484
      %486 = vrot.lane.b32.xlu0 %v258, 110
      %v487 = vpop.permute.xlu0 %486
      %488 = vrot.lane.b32.xlu0 %v259, 110
      %v489 = vpop.permute.xlu0 %488
      %vm490 = vcmask 900096
      %v491 = vsel %vm490, %v485, %v487
      %v492 = vsel %vm490, %v487, %v489
      %v496 = vsel %vm278, %v483, 0
      %498 = vmatpush.msra.mxu0 0.0
      %499 = vmatpush.msra.mxu0 0.0
      %500 = vmatpush.msra.mxu0 0.0
      %501 = vmatpush.msra.mxu0 0.0
      %502 = vmatpush.msra.mxu0 0.0
      %503 = vmatpush.msra.mxu0 0.0
      %504 = vmatpush.msra.mxu0 0.0
      %505 = vmatpush.msra.mxu0 0.0
      %506 = vmatpush.msra.mxu0 0.0
      %507 = vmatpush.msra.mxu0 0.0
      %508 = vmatpush.msra.mxu0 0.0
      %509 = vmatpush.msra.mxu0 0.0
      %510 = vmatpush.msra.mxu0 0.0
      %511 = vmatpush.msra.mxu0 0.0
      %512 = vmatpush.msra.mxu0 0.0
      %513 = vmatpush.msra.mxu0 %v491
      %514 = vmatmul.f32.gmra.mxu0 %v496
      %v515 = vpop.f32.mrf.mxu0
      %v516 = vadd.f32 0.0, %v515
      %517 = vdwg.mxu0
      %518 = vmatpush.msra.mxu0 0.0
      %519 = vmatpush.msra.mxu0 0.0
      %520 = vmatpush.msra.mxu0 0.0
      %521 = vmatpush.msra.mxu0 0.0
      %522 = vmatpush.msra.mxu0 0.0
      %523 = vmatpush.msra.mxu0 0.0
      %524 = vmatpush.msra.mxu0 0.0
      %525 = vmatpush.msra.mxu0 0.0
      %526 = vmatpush.msra.mxu0 0.0
      %527 = vmatpush.msra.mxu0 0.0
      %528 = vmatpush.msra.mxu0 0.0
      %529 = vmatpush.msra.mxu0 0.0
      %530 = vmatpush.msra.mxu0 0.0
      %531 = vmatpush.msra.mxu0 0.0
      %532 = vmatpush.msra.mxu0 0.0
      %533 = vmatpush.msra.mxu0 %v492
      %534 = vmatmul.f32.gmra.mxu0 %v496
      %v535 = vpop.f32.mrf.mxu0
      %v536 = vadd.f32 0.0, %v535
      %537 = vdwg.mxu0
      %538 = vmatpush.msra.mxu0 0.0
      %539 = vmatpush.msra.mxu0 0.0
      %540 = vmatpush.msra.mxu0 0.0
      %541 = vmatpush.msra.mxu0 0.0
      %542 = vmatpush.msra.mxu0 0.0
      %543 = vmatpush.msra.mxu0 0.0
      %544 = vmatpush.msra.mxu0 0.0
      %545 = vmatpush.msra.mxu0 0.0
      %546 = vmatpush.msra.mxu0 0.0
      %547 = vmatpush.msra.mxu0 0.0
      %548 = vmatpush.msra.mxu0 0.0
      %549 = vmatpush.msra.mxu0 0.0
      %550 = vmatpush.msra.mxu0 0.0
      %551 = vmatpush.msra.mxu0 0.0
      %552 = vmatpush.msra.mxu0 0.0
      %553 = vmatpush.msra.mxu0 %v489
      %554 = vmatmul.f32.gmra.mxu0 %v496
      %v555 = vpop.f32.mrf.mxu0
      %v556 = vadd.f32 0.0, %v555
      %557 = vdwg.mxu0
      %v558 = vadd.f32 %v479, %v516
      %v559 = vadd.f32 %v480, %v536
      %v560 = vadd.f32 %v481, %v556
      %561 = vrot.lane.b32.xlu0 %v253, 96
      %v562 = vpop.permute.xlu0 %561
      %563 = vrot.lane.b32.xlu0 %v257, 109
      %v564 = vpop.permute.xlu0 %563
      %565 = vrot.lane.b32.xlu0 %v258, 109
      %v566 = vpop.permute.xlu0 %565
      %567 = vrot.lane.b32.xlu0 %v259, 109
      %v568 = vpop.permute.xlu0 %567
      %vm569 = vcmask 891904
      %v570 = vsel %vm569, %v564, %v566
      %v571 = vsel %vm569, %v566, %v568
      %v575 = vsel %vm278, %v562, 0
      %577 = vmatpush.msra.mxu0 0.0
      %578 = vmatpush.msra.mxu0 0.0
      %579 = vmatpush.msra.mxu0 0.0
      %580 = vmatpush.msra.mxu0 0.0
      %581 = vmatpush.msra.mxu0 0.0
      %582 = vmatpush.msra.mxu0 0.0
      %583 = vmatpush.msra.mxu0 0.0
      %584 = vmatpush.msra.mxu0 0.0
      %585 = vmatpush.msra.mxu0 0.0
      %586 = vmatpush.msra.mxu0 0.0
      %587 = vmatpush.msra.mxu0 0.0
      %588 = vmatpush.msra.mxu0 0.0
      %589 = vmatpush.msra.mxu0 0.0
      %590 = vmatpush.msra.mxu0 0.0
      %591 = vmatpush.msra.mxu0 0.0
      %592 = vmatpush.msra.mxu0 %v570
      %593 = vmatmul.f32.gmra.mxu0 %v575
      %v594 = vpop.f32.mrf.mxu0
      %v595 = vadd.f32 0.0, %v594
      %596 = vdwg.mxu0
      %597 = vmatpush.msra.mxu0 0.0
      %598 = vmatpush.msra.mxu0 0.0
      %599 = vmatpush.msra.mxu0 0.0
      %600 = vmatpush.msra.mxu0 0.0
      %601 = vmatpush.msra.mxu0 0.0
      %602 = vmatpush.msra.mxu0 0.0
      %603 = vmatpush.msra.mxu0 0.0
      %604 = vmatpush.msra.mxu0 0.0
      %605 = vmatpush.msra.mxu0 0.0
      %606 = vmatpush.msra.mxu0 0.0
      %607 = vmatpush.msra.mxu0 0.0
      %608 = vmatpush.msra.mxu0 0.0
      %609 = vmatpush.msra.mxu0 0.0
      %610 = vmatpush.msra.mxu0 0.0
      %611 = vmatpush.msra.mxu0 0.0
      %612 = vmatpush.msra.mxu0 %v571
      %613 = vmatmul.f32.gmra.mxu0 %v575
      %v614 = vpop.f32.mrf.mxu0
      %v615 = vadd.f32 0.0, %v614
      %616 = vdwg.mxu0
      %617 = vmatpush.msra.mxu0 0.0
      %618 = vmatpush.msra.mxu0 0.0
      %619 = vmatpush.msra.mxu0 0.0
      %620 = vmatpush.msra.mxu0 0.0
      %621 = vmatpush.msra.mxu0 0.0
      %622 = vmatpush.msra.mxu0 0.0
      %623 = vmatpush.msra.mxu0 0.0
      %624 = vmatpush.msra.mxu0 0.0
      %625 = vmatpush.msra.mxu0 0.0
      %626 = vmatpush.msra.mxu0 0.0
      %627 = vmatpush.msra.mxu0 0.0
      %628 = vmatpush.msra.mxu0 0.0
      %629 = vmatpush.msra.mxu0 0.0
      %630 = vmatpush.msra.mxu0 0.0
      %631 = vmatpush.msra.mxu0 0.0
      %632 = vmatpush.msra.mxu0 %v568
      %633 = vmatmul.f32.gmra.mxu0 %v575
      %v634 = vpop.f32.mrf.mxu0
      %v635 = vadd.f32 0.0, %v634
      %636 = vdwg.mxu0
      %v637 = vadd.f32 %v558, %v595
      %v638 = vadd.f32 %v559, %v615
      %v639 = vadd.f32 %v560, %v635
      %640 = vrot.lane.b32.xlu0 %v253, 88
      %v641 = vpop.permute.xlu0 %640
      %642 = vrot.lane.b32.xlu0 %v257, 108
      %v643 = vpop.permute.xlu0 %642
      %644 = vrot.lane.b32.xlu0 %v258, 108
      %v645 = vpop.permute.xlu0 %644
      %646 = vrot.lane.b32.xlu0 %v259, 108
      %v647 = vpop.permute.xlu0 %646
      %vm648 = vcmask 883712
      %v649 = vsel %vm648, %v643, %v645
      %v650 = vsel %vm648, %v645, %v647
      %v654 = vsel %vm278, %v641, 0
      %656 = vmatpush.msra.mxu0 0.0
      %657 = vmatpush.msra.mxu0 0.0
      %658 = vmatpush.msra.mxu0 0.0
      %659 = vmatpush.msra.mxu0 0.0
      %660 = vmatpush.msra.mxu0 0.0
      %661 = vmatpush.msra.mxu0 0.0
      %662 = vmatpush.msra.mxu0 0.0
      %663 = vmatpush.msra.mxu0 0.0
      %664 = vmatpush.msra.mxu0 0.0
      %665 = vmatpush.msra.mxu0 0.0
      %666 = vmatpush.msra.mxu0 0.0
      %667 = vmatpush.msra.mxu0 0.0
      %668 = vmatpush.msra.mxu0 0.0
      %669 = vmatpush.msra.mxu0 0.0
      %670 = vmatpush.msra.mxu0 0.0
      %671 = vmatpush.msra.mxu0 %v649
      %672 = vmatmul.f32.gmra.mxu0 %v654
      %v673 = vpop.f32.mrf.mxu0
      %v674 = vadd.f32 0.0, %v673
      %675 = vdwg.mxu0
      %676 = vmatpush.msra.mxu0 0.0
      %677 = vmatpush.msra.mxu0 0.0
      %678 = vmatpush.msra.mxu0 0.0
      %679 = vmatpush.msra.mxu0 0.0
      %680 = vmatpush.msra.mxu0 0.0
      %681 = vmatpush.msra.mxu0 0.0
      %682 = vmatpush.msra.mxu0 0.0
      %683 = vmatpush.msra.mxu0 0.0
      %684 = vmatpush.msra.mxu0 0.0
      %685 = vmatpush.msra.mxu0 0.0
      %686 = vmatpush.msra.mxu0 0.0
      %687 = vmatpush.msra.mxu0 0.0
      %688 = vmatpush.msra.mxu0 0.0
      %689 = vmatpush.msra.mxu0 0.0
      %690 = vmatpush.msra.mxu0 0.0
      %691 = vmatpush.msra.mxu0 %v650
      %692 = vmatmul.f32.gmra.mxu0 %v654
      %v693 = vpop.f32.mrf.mxu0
      %v694 = vadd.f32 0.0, %v693
      %695 = vdwg.mxu0
      %696 = vmatpush.msra.mxu0 0.0
      %697 = vmatpush.msra.mxu0 0.0
      %698 = vmatpush.msra.mxu0 0.0
      %699 = vmatpush.msra.mxu0 0.0
      %700 = vmatpush.msra.mxu0 0.0
      %701 = vmatpush.msra.mxu0 0.0
      %702 = vmatpush.msra.mxu0 0.0
      %703 = vmatpush.msra.mxu0 0.0
      %704 = vmatpush.msra.mxu0 0.0
      %705 = vmatpush.msra.mxu0 0.0
      %706 = vmatpush.msra.mxu0 0.0
      %707 = vmatpush.msra.mxu0 0.0
      %708 = vmatpush.msra.mxu0 0.0
      %709 = vmatpush.msra.mxu0 0.0
      %710 = vmatpush.msra.mxu0 0.0
      %711 = vmatpush.msra.mxu0 %v647
      %712 = vmatmul.f32.gmra.mxu0 %v654
      %v713 = vpop.f32.mrf.mxu0
      %v714 = vadd.f32 0.0, %v713
      %715 = vdwg.mxu0
      %v716 = vadd.f32 %v637, %v674
      %v717 = vadd.f32 %v638, %v694
      %v718 = vadd.f32 %v639, %v714
      %719 = vrot.lane.b32.xlu0 %v253, 80
      %v720 = vpop.permute.xlu0 %719
      %721 = vrot.lane.b32.xlu0 %v257, 92
      %v722 = vpop.permute.xlu0 %721
      %723 = vrot.lane.b32.xlu0 %v258, 92
      %v724 = vpop.permute.xlu0 %723
      %725 = vrot.lane.b32.xlu0 %v259, 92
      %v726 = vpop.permute.xlu0 %725
      %vm727 = vcmask 752640
      %v728 = vsel %vm727, %v722, %v724
      %v729 = vsel %vm727, %v724, %v726
      %v733 = vsel %vm278, %v720, 0
      %735 = vmatpush.msra.mxu0 0.0
      %736 = vmatpush.msra.mxu0 0.0
      %737 = vmatpush.msra.mxu0 0.0
      %738 = vmatpush.msra.mxu0 0.0
      %739 = vmatpush.msra.mxu0 0.0
      %740 = vmatpush.msra.mxu0 0.0
      %741 = vmatpush.msra.mxu0 0.0
      %742 = vmatpush.msra.mxu0 0.0
      %743 = vmatpush.msra.mxu0 0.0
      %744 = vmatpush.msra.mxu0 0.0
      %745 = vmatpush.msra.mxu0 0.0
      %746 = vmatpush.msra.mxu0 0.0
      %747 = vmatpush.msra.mxu0 0.0
      %748 = vmatpush.msra.mxu0 0.0
      %749 = vmatpush.msra.mxu0 0.0
      %750 = vmatpush.msra.mxu0 %v728
      %751 = vmatmul.f32.gmra.mxu0 %v733
      %v752 = vpop.f32.mrf.mxu0
      %v753 = vadd.f32 0.0, %v752
      %754 = vdwg.mxu0
      %755 = vmatpush.msra.mxu0 0.0
      %756 = vmatpush.msra.mxu0 0.0
      %757 = vmatpush.msra.mxu0 0.0
      %758 = vmatpush.msra.mxu0 0.0
      %759 = vmatpush.msra.mxu0 0.0
      %760 = vmatpush.msra.mxu0 0.0
      %761 = vmatpush.msra.mxu0 0.0
      %762 = vmatpush.msra.mxu0 0.0
      %763 = vmatpush.msra.mxu0 0.0
      %764 = vmatpush.msra.mxu0 0.0
      %765 = vmatpush.msra.mxu0 0.0
      %766 = vmatpush.msra.mxu0 0.0
      %767 = vmatpush.msra.mxu0 0.0
      %768 = vmatpush.msra.mxu0 0.0
      %769 = vmatpush.msra.mxu0 0.0
      %770 = vmatpush.msra.mxu0 %v729
      %771 = vmatmul.f32.gmra.mxu0 %v733
      %v772 = vpop.f32.mrf.mxu0
      %v773 = vadd.f32 0.0, %v772
      %774 = vdwg.mxu0
      %775 = vmatpush.msra.mxu0 0.0
      %776 = vmatpush.msra.mxu0 0.0
      %777 = vmatpush.msra.mxu0 0.0
      %778 = vmatpush.msra.mxu0 0.0
      %779 = vmatpush.msra.mxu0 0.0
      %780 = vmatpush.msra.mxu0 0.0
      %781 = vmatpush.msra.mxu0 0.0
      %782 = vmatpush.msra.mxu0 0.0
      %783 = vmatpush.msra.mxu0 0.0
      %784 = vmatpush.msra.mxu0 0.0
      %785 = vmatpush.msra.mxu0 0.0
      %786 = vmatpush.msra.mxu0 0.0
      %787 = vmatpush.msra.mxu0 0.0
      %788 = vmatpush.msra.mxu0 0.0
      %789 = vmatpush.msra.mxu0 0.0
      %790 = vmatpush.msra.mxu0 %v726
      %791 = vmatmul.f32.gmra.mxu0 %v733
      %v792 = vpop.f32.mrf.mxu0
      %v793 = vadd.f32 0.0, %v792
      %794 = vdwg.mxu0
      %v795 = vadd.f32 %v716, %v753
      %v796 = vadd.f32 %v717, %v773
      %v797 = vadd.f32 %v718, %v793
      %798 = vrot.lane.b32.xlu0 %v253, 72
      %v799 = vpop.permute.xlu0 %798
      %800 = vrot.lane.b32.xlu0 %v257, 91
      %v801 = vpop.permute.xlu0 %800
      %802 = vrot.lane.b32.xlu0 %v258, 91
      %v803 = vpop.permute.xlu0 %802
      %804 = vrot.lane.b32.xlu0 %v259, 91
      %v805 = vpop.permute.xlu0 %804
      %vm806 = vcmask 744448
      %v807 = vsel %vm806, %v801, %v803
      %v808 = vsel %vm806, %v803, %v805
      %v812 = vsel %vm278, %v799, 0
      %814 = vmatpush.msra.mxu0 0.0
      %815 = vmatpush.msra.mxu0 0.0
      %816 = vmatpush.msra.mxu0 0.0
      %817 = vmatpush.msra.mxu0 0.0
      %818 = vmatpush.msra.mxu0 0.0
      %819 = vmatpush.msra.mxu0 0.0
      %820 = vmatpush.msra.mxu0 0.0
      %821 = vmatpush.msra.mxu0 0.0
      %822 = vmatpush.msra.mxu0 0.0
      %823 = vmatpush.msra.mxu0 0.0
      %824 = vmatpush.msra.mxu0 0.0
      %825 = vmatpush.msra.mxu0 0.0
      %826 = vmatpush.msra.mxu0 0.0
      %827 = vmatpush.msra.mxu0 0.0
      %828 = vmatpush.msra.mxu0 0.0
      %829 = vmatpush.msra.mxu0 %v807
      %830 = vmatmul.f32.gmra.mxu0 %v812
      %v831 = vpop.f32.mrf.mxu0
      %v832 = vadd.f32 0.0, %v831
      %833 = vdwg.mxu0
      %834 = vmatpush.msra.mxu0 0.0
      %835 = vmatpush.msra.mxu0 0.0
      %836 = vmatpush.msra.mxu0 0.0
      %837 = vmatpush.msra.mxu0 0.0
      %838 = vmatpush.msra.mxu0 0.0
      %839 = vmatpush.msra.mxu0 0.0
      %840 = vmatpush.msra.mxu0 0.0
      %841 = vmatpush.msra.mxu0 0.0
      %842 = vmatpush.msra.mxu0 0.0
      %843 = vmatpush.msra.mxu0 0.0
      %844 = vmatpush.msra.mxu0 0.0
      %845 = vmatpush.msra.mxu0 0.0
      %846 = vmatpush.msra.mxu0 0.0
      %847 = vmatpush.msra.mxu0 0.0
      %848 = vmatpush.msra.mxu0 0.0
      %849 = vmatpush.msra.mxu0 %v808
      %850 = vmatmul.f32.gmra.mxu0 %v812
      %v851 = vpop.f32.mrf.mxu0
      %v852 = vadd.f32 0.0, %v851
      %853 = vdwg.mxu0
      %854 = vmatpush.msra.mxu0 0.0
      %855 = vmatpush.msra.mxu0 0.0
      %856 = vmatpush.msra.mxu0 0.0
      %857 = vmatpush.msra.mxu0 0.0
      %858 = vmatpush.msra.mxu0 0.0
      %859 = vmatpush.msra.mxu0 0.0
      %860 = vmatpush.msra.mxu0 0.0
      %861 = vmatpush.msra.mxu0 0.0
      %862 = vmatpush.msra.mxu0 0.0
      %863 = vmatpush.msra.mxu0 0.0
      %864 = vmatpush.msra.mxu0 0.0
      %865 = vmatpush.msra.mxu0 0.0
      %866 = vmatpush.msra.mxu0 0.0
      %867 = vmatpush.msra.mxu0 0.0
      %868 = vmatpush.msra.mxu0 0.0
      %869 = vmatpush.msra.mxu0 %v805
      %870 = vmatmul.f32.gmra.mxu0 %v812
      %v871 = vpop.f32.mrf.mxu0
      %v872 = vadd.f32 0.0, %v871
      %873 = vdwg.mxu0
      %v874 = vadd.f32 %v795, %v832
      %v875 = vadd.f32 %v796, %v852
      %v876 = vadd.f32 %v797, %v872
      %877 = vrot.lane.b32.xlu0 %v253, 64
      %v878 = vpop.permute.xlu0 %877
      %879 = vrot.lane.b32.xlu0 %v257, 90
      %v880 = vpop.permute.xlu0 %879
      %881 = vrot.lane.b32.xlu0 %v258, 90
      %v882 = vpop.permute.xlu0 %881
      %883 = vrot.lane.b32.xlu0 %v259, 90
      %v884 = vpop.permute.xlu0 %883
      %vm885 = vcmask 736256
      %v886 = vsel %vm885, %v880, %v882
      %v887 = vsel %vm885, %v882, %v884
      %v891 = vsel %vm278, %v878, 0
      %893 = vmatpush.msra.mxu0 0.0
      %894 = vmatpush.msra.mxu0 0.0
      %895 = vmatpush.msra.mxu0 0.0
      %896 = vmatpush.msra.mxu0 0.0
      %897 = vmatpush.msra.mxu0 0.0
      %898 = vmatpush.msra.mxu0 0.0
      %899 = vmatpush.msra.mxu0 0.0
      %900 = vmatpush.msra.mxu0 0.0
      %901 = vmatpush.msra.mxu0 0.0
      %902 = vmatpush.msra.mxu0 0.0
      %903 = vmatpush.msra.mxu0 0.0
      %904 = vmatpush.msra.mxu0 0.0
      %905 = vmatpush.msra.mxu0 0.0
      %906 = vmatpush.msra.mxu0 0.0
      %907 = vmatpush.msra.mxu0 0.0
      %908 = vmatpush.msra.mxu0 %v886
      %909 = vmatmul.f32.gmra.mxu0 %v891
      %v910 = vpop.f32.mrf.mxu0
      %v911 = vadd.f32 0.0, %v910
      %912 = vdwg.mxu0
      %913 = vmatpush.msra.mxu0 0.0
      %914 = vmatpush.msra.mxu0 0.0
      %915 = vmatpush.msra.mxu0 0.0
      %916 = vmatpush.msra.mxu0 0.0
      %917 = vmatpush.msra.mxu0 0.0
      %918 = vmatpush.msra.mxu0 0.0
      %919 = vmatpush.msra.mxu0 0.0
      %920 = vmatpush.msra.mxu0 0.0
      %921 = vmatpush.msra.mxu0 0.0
      %922 = vmatpush.msra.mxu0 0.0
      %923 = vmatpush.msra.mxu0 0.0
      %924 = vmatpush.msra.mxu0 0.0
      %925 = vmatpush.msra.mxu0 0.0
      %926 = vmatpush.msra.mxu0 0.0
      %927 = vmatpush.msra.mxu0 0.0
      %928 = vmatpush.msra.mxu0 %v887
      %929 = vmatmul.f32.gmra.mxu0 %v891
      %v930 = vpop.f32.mrf.mxu0
      %v931 = vadd.f32 0.0, %v930
      %932 = vdwg.mxu0
      %933 = vmatpush.msra.mxu0 0.0
      %934 = vmatpush.msra.mxu0 0.0
      %935 = vmatpush.msra.mxu0 0.0
      %936 = vmatpush.msra.mxu0 0.0
      %937 = vmatpush.msra.mxu0 0.0
      %938 = vmatpush.msra.mxu0 0.0
      %939 = vmatpush.msra.mxu0 0.0
      %940 = vmatpush.msra.mxu0 0.0
      %941 = vmatpush.msra.mxu0 0.0
      %942 = vmatpush.msra.mxu0 0.0
      %943 = vmatpush.msra.mxu0 0.0
      %944 = vmatpush.msra.mxu0 0.0
      %945 = vmatpush.msra.mxu0 0.0
      %946 = vmatpush.msra.mxu0 0.0
      %947 = vmatpush.msra.mxu0 0.0
      %948 = vmatpush.msra.mxu0 %v884
      %949 = vmatmul.f32.gmra.mxu0 %v891
      %v950 = vpop.f32.mrf.mxu0
      %v951 = vadd.f32 0.0, %v950
      %952 = vdwg.mxu0
      %v953 = vadd.f32 %v874, %v911
      %v954 = vadd.f32 %v875, %v931
      %v955 = vadd.f32 %v876, %v951
      %957 = vset.pattern.permute.xlu0 0
      %958 = vperm.xlu0 %957, %v254
      %v959 = vpop.permute.xlu0 %958
      %v961 = vadd.f32 %v953, %v959
      %v962 = vadd.f32 %v954, %v959
      %v963 = vadd.f32 %v955, %v959
      %v964 = vmul.f32 %v961, 0.2
      %v965 = vmul.f32 %v962, 0.2
      %v966 = vmul.f32 %v963, 0.2
      %v967 = vmax.f32 %v961, %v964
      %v968 = vmax.f32 %v962, %v965
      %v969 = vmax.f32 %v963, %v966
      %v971 = vperm.slane %v252, 0
      %v972 = vperm.slane %v252, 1
      %v973 = vperm.slane %v252, 2
      %v977 = vmul.f32 %v967, %v971
      %v978 = vmul.f32 %v968, %v972
      %v979 = vmul.f32 %v969, %v973
      %vm980 = vcmask 1043456
      %v981 = vsel %vm980, %v977, 0.0
      %v982 = vsel %vm980, %v978, 0.0
      %v983 = vadd.f32 %v981, %v982
      %vm984 = vcmask 240640
      %v985 = vsel %vm984, %v979, 0.0
      %v986 = vadd.f32 %v983, %v985
      %987 = vadd.xlane.f32.xlu0 %v986
      %v988 = vpop.xlane.xlu0 %987
      %v989 = vmul.f32 %v977, %v967
      %v990 = vmul.f32 %v978, %v968
      %v991 = vmul.f32 %v979, %v969
      %v992 = vsel %vm980, %v989, 0.0
      %v993 = vsel %vm980, %v990, 0.0
      %v994 = vadd.f32 %v992, %v993
      %v995 = vsel %vm984, %v991, 0.0
      %v996 = vadd.f32 %v994, %v995
      %997 = vadd.xlane.f32.xlu0 %v996
      %v998 = vpop.xlane.xlu0 %997
      %v999 = vmul.f32 %v988, 0.00390625
      %v1000 = vmul.f32 %v998, 0.00390625
      %v1001 = vmul.f32 %v999, %v999
      %v1002 = vsub.f32 %v1000, %v1001
      %v1003 = vmax.f32 %v1002, 0.0
      %v1004 = vsub.f32 %v967, %v999
      %v1005 = vsub.f32 %v968, %v999
      %v1006 = vsub.f32 %v969, %v999
      %v1007 = vadd.f32 %v1003, 1e-08
      %v1008 = vrsqrt.pop %v1007
      %v1009 = vmul.f32 %v1008, %v1007
      %v1010 = vmul.f32 %v1009, %v1008
      %v1011 = vmul.f32 0.5, %v1010
      %v1012 = vsub.f32 1.5, %v1011
      %v1013 = vmul.f32 %v1008, %v1012
      %vm1014 = vweird.f32 %v1007
      %vm1015 = vweird.f32 %v1008
      %vm1016 = vmor %vm1014, %vm1015
      %v1017 = vsel %vm1016, %v1008, %v1013
      %v1018 = vmul.f32 %v1004, %v1017
      %v1019 = vmul.f32 %v1005, %v1017
      %v1020 = vmul.f32 %v1006, %v1017
      %1022 = vset.pattern.permute.xlu0 0
      %1023 = vperm.xlu0 %1022, %v256
      %v1024 = vpop.permute.xlu0 %1023
      %vm1026 = vcmask 31744
      %v1028 = vsel %vm1026, %v255, 0
      %v1031 = vsel %vm980, %v1018, 0
      %v1034 = vsel %vm980, %v1019, 0
      %v1037 = vsel %vm980, %v1020, 0
      %1039 = vmatpush.msra.mxu0 0.0
      %1040 = vmatpush.msra.mxu0 0.0
      %1041 = vmatpush.msra.mxu0 0.0
      %1042 = vmatpush.msra.mxu0 0.0
      %1043 = vmatpush.msra.mxu0 0.0
      %1044 = vmatpush.msra.mxu0 0.0
      %1045 = vmatpush.msra.mxu0 0.0
      %1046 = vmatpush.msra.mxu0 0.0
      %1047 = vmatpush.msra.mxu0 0.0
      %1048 = vmatpush.msra.mxu0 0.0
      %1049 = vmatpush.msra.mxu0 0.0
      %1050 = vmatpush.msra.mxu0 0.0
      %1051 = vmatpush.msra.mxu0 0.0
      %1052 = vmatpush.msra.mxu0 0.0
      %1053 = vmatpush.msra.mxu0 0.0
      %1054 = vmatpush.msra.mxu0 %v1031
      %1055 = vmatmul.f32.gmra.mxu0 %v1028
      %v1056 = vpop.f32.mrf.mxu0
      %v1057 = vadd.f32 %v1024, %v1056
      %1058 = vdwg.mxu0
      %1059 = vmatpush.msra.mxu0 0.0
      %1060 = vmatpush.msra.mxu0 0.0
      %1061 = vmatpush.msra.mxu0 0.0
      %1062 = vmatpush.msra.mxu0 0.0
      %1063 = vmatpush.msra.mxu0 0.0
      %1064 = vmatpush.msra.mxu0 0.0
      %1065 = vmatpush.msra.mxu0 0.0
      %1066 = vmatpush.msra.mxu0 0.0
      %1067 = vmatpush.msra.mxu0 0.0
      %1068 = vmatpush.msra.mxu0 0.0
      %1069 = vmatpush.msra.mxu0 0.0
      %1070 = vmatpush.msra.mxu0 0.0
      %1071 = vmatpush.msra.mxu0 0.0
      %1072 = vmatpush.msra.mxu0 0.0
      %1073 = vmatpush.msra.mxu0 0.0
      %1074 = vmatpush.msra.mxu0 %v1034
      %1075 = vmatmul.f32.gmra.mxu0 %v1028
      %v1076 = vpop.f32.mrf.mxu0
      %v1077 = vadd.f32 %v1024, %v1076
      %1078 = vdwg.mxu0
      %1079 = vmatpush.msra.mxu0 0.0
      %1080 = vmatpush.msra.mxu0 0.0
      %1081 = vmatpush.msra.mxu0 0.0
      %1082 = vmatpush.msra.mxu0 0.0
      %1083 = vmatpush.msra.mxu0 0.0
      %1084 = vmatpush.msra.mxu0 0.0
      %1085 = vmatpush.msra.mxu0 0.0
      %1086 = vmatpush.msra.mxu0 0.0
      %1087 = vmatpush.msra.mxu0 0.0
      %1088 = vmatpush.msra.mxu0 0.0
      %1089 = vmatpush.msra.mxu0 0.0
      %1090 = vmatpush.msra.mxu0 0.0
      %1091 = vmatpush.msra.mxu0 0.0
      %1092 = vmatpush.msra.mxu0 0.0
      %1093 = vmatpush.msra.mxu0 0.0
      %1094 = vmatpush.msra.mxu0 %v1037
      %1095 = vmatmul.f32.gmra.mxu0 %v1028
      %v1096 = vpop.f32.mrf.mxu0
      %v1097 = vadd.f32 %v1024, %v1096
      %1098 = vdwg.mxu0
      %v1099 = vxor.u32 %v1057, 2147483648
      %v1100 = vxor.u32 %v1077, 2147483648
      %v1101 = vxor.u32 %v1097, 2147483648
      %v1102 = vmul.f32 %v1099, 1.442695
      %v1103 = vpow.pop %v1102
      %v1104 = vmul.f32 %v1100, 1.442695
      %v1105 = vpow.pop %v1104
      %v1106 = vmul.f32 %v1101, 1.442695
      %v1107 = vpow.pop %v1106
      %v1108 = vadd.f32 %v1103, 1.0
      %v1109 = vadd.f32 %v1105, 1.0
      %v1110 = vadd.f32 %v1107, 1.0
      %v1111 = vrcp.pop %v1108
      %v1112 = vmul.f32 %v1108, %v1111
      %v1113 = vsub.f32 1.0, %v1112
      %v1114 = vmul.f32 %v1111, %v1113
      %v1115 = vadd.f32 %v1111, %v1114
      %vm1116 = vweird.f32 %v1108
      %vm1117 = vweird.f32 %v1111
      %vm1118 = vmor %vm1116, %vm1117
      %v1119 = vsel %vm1118, %v1111, %v1115
      %v1120 = vand.u32 2147483647, %v1108
      %vm1121 = vcmp.eq.f32.partialorder %v1120, 8.507059e+37
      %v1122 = vand.u32 %v1108, 2147483648
      %v1123 = vor.u32 1.1754944e-38, %v1122
      %v1124 = vsel %vm1121, %v1123, %v1119
      %v1125 = vmul.f32 1.0, %v1124
      %v1126 = vrcp.pop %v1109
      %v1127 = vmul.f32 %v1109, %v1126
      %v1128 = vsub.f32 1.0, %v1127
      %v1129 = vmul.f32 %v1126, %v1128
      %v1130 = vadd.f32 %v1126, %v1129
      %vm1131 = vweird.f32 %v1109
      %vm1132 = vweird.f32 %v1126
      %vm1133 = vmor %vm1131, %vm1132
      %v1134 = vsel %vm1133, %v1126, %v1130
      %v1135 = vand.u32 2147483647, %v1109
      %vm1136 = vcmp.eq.f32.partialorder %v1135, 8.507059e+37
      %v1137 = vand.u32 %v1109, 2147483648
      %v1138 = vor.u32 1.1754944e-38, %v1137
      %v1139 = vsel %vm1136, %v1138, %v1134
      %v1140 = vmul.f32 1.0, %v1139
      %v1141 = vrcp.pop %v1110
      %v1142 = vmul.f32 %v1110, %v1141
      %v1143 = vsub.f32 1.0, %v1142
      %v1144 = vmul.f32 %v1141, %v1143
      %v1145 = vadd.f32 %v1141, %v1144
      %vm1146 = vweird.f32 %v1110
      %vm1147 = vweird.f32 %v1141
      %vm1148 = vmor %vm1146, %vm1147
      %v1149 = vsel %vm1148, %v1141, %v1145
      %v1150 = vand.u32 2147483647, %v1110
      %vm1151 = vcmp.eq.f32.partialorder %v1150, 8.507059e+37
      %v1152 = vand.u32 %v1110, 2147483648
      %v1153 = vor.u32 1.1754944e-38, %v1152
      %v1154 = vsel %vm1151, %v1153, %v1149
      %v1155 = vmul.f32 1.0, %v1154
      %v1156 = vrot.slane %v257, 4
      %v1157 = vrot.slane %v258, 4
      %v1158 = vrot.slane %v259, 4
      %v1162 = vadd.f32 %v257, %v1156
      %v1163 = vadd.f32 %v258, %v1157
      %v1164 = vadd.f32 %v259, %v1158
      %v1165 = vmul.f32 %v1162, 0.5
      %v1166 = vmul.f32 %v1163, 0.5
      %v1167 = vmul.f32 %v1164, 0.5
      %v1168 = vmul.f32 %v1125, 0.5
      %v1169 = vmul.f32 %v1140, 0.5
      %v1170 = vmul.f32 %v1155, 0.5
      %v1171 = vsub.f32 %v257, %v1156
      %v1172 = vsub.f32 %v258, %v1157
      %v1173 = vsub.f32 %v259, %v1158
      %1177 = vrot.lane.b32.xlu0 %v1171, 109
      %v1178 = vpop.permute.xlu0 %1177
      %1179 = vrot.lane.b32.xlu0 %v1172, 109
      %v1180 = vpop.permute.xlu0 %1179
      %1181 = vrot.lane.b32.xlu0 %v1173, 109
      %v1182 = vpop.permute.xlu0 %1181
      %v1183 = vsel %vm569, %v1178, %v1180
      %v1184 = vsel %vm569, %v1180, %v1182
      %v1188 = vmul.f32 %v1168, %v1183
      %v1189 = vmul.f32 %v1169, %v1184
      %v1190 = vmul.f32 %v1170, %v1182
      %1194 = vrot.lane.b32.xlu0 %v1188, 19
      %v1195 = vpop.permute.xlu0 %1194
      %1196 = vrot.lane.b32.xlu0 %v1189, 19
      %v1197 = vpop.permute.xlu0 %1196
      %1198 = vrot.lane.b32.xlu0 %v1190, 19
      %v1199 = vpop.permute.xlu0 %1198
      %vm1200 = vcmask 154624
      %v1201 = vsel %vm1200, %v1195, %v1197
      %v1202 = vsel %vm1200, %v1197, %v1199
      %v1206 = vadd.f32 %v1165, %v1195
      %v1207 = vadd.f32 %v1166, %v1201
      %v1208 = vadd.f32 %v1167, %v1202
      %v1212 = vrot.slane %v1207, 4
      %v1213 = vsel %vm980, %v1206, %v1212
      %1214 = vrot.lane.b32.xlu0 %v1213, 109
      %v1215 = vpop.permute.xlu0 %1214
      %1216 = vrot.lane.b32.xlu0 %v1208, 109
      %v1217 = vpop.permute.xlu0 %1216
      %v1218 = vrot.slane %v1215, 4
      %v1219 = vrot.slane %v1217, 4
      %v1220 = vsel %vm980, %v1218, %v1219
      %v1221 = vsel %vm569, %v1215, %v1220
      %1224 = vst [vmem:[%s251] sm:$0xff] %v1221
      %1225 = vst.msk [vmem:[%s251 + $0x8] sm:$0xf] %vm984, %v1217
      %p1226 = scmp.lt.s32.totalorder %s17, 1
      %s1227 = scalar_select %p1226, %s17, 1
      %s1228 = smul.addr %s1227, 3
      %s1229 = smul.addr %s1228, 4
      %s1230 = scalar_lea.vmem %s6, %s1229
      // Predicated region
      $region45: #{affa_forward.1} parent=43 // pred_check
        %p1231 = pneg %p166
      $region46: #{affa_forward.1} parent=43 // pred_check_branch
        %1233 = sbr.rel (%p1231) target = $region48
      $region47: #{affa_forward.1} parent=43 // pred_region
        _
      $region48: #{affa_forward.1} parent=43 // pred_fallthru
        _
    $region44: #{affa_forward.1} parent=5 // pred_fallthru
      _
    %p1234 = scmp.le.s32.totalorder 2, %s12
    // Predicated region
    $region49: #{affa_forward.1} parent=5 // pred_check
      %p1235 = pneg %p1234
    $region50: #{affa_forward.1} parent=5 // pred_check_branch
      %1237 = sbr.rel (%p1235) target = $region52
    $region51: #{affa_forward.1} parent=5 // pred_region
      %s1238 = ssub.s32 %s12, 2
      // Predicated region
      $region53: #{affa_forward.1} parent=51 // pred_check
        %p1239 = pneg %p172
      $region54: #{affa_forward.1} parent=51 // pred_check_branch
        %1241 = sbr.rel (%p1239) target = $region56
      $region55: #{affa_forward.1} parent=51 // pred_region
        %p1242 = scmp.lt.s32.totalorder %s18, 1
        %s1243 = scalar_select %p1242, %s18, 1
        %s1244 = smul.addr %s1243, 3
        %s1245 = smul.addr %s1244, 4
        %s1246 = scalar_lea.vmem %s6, %s1245
      $region56: #{affa_forward.1} parent=51 // pred_fallthru
        _
    $region52: #{affa_forward.1} parent=5 // pred_fallthru
      _
  $region6: #{affa_forward.1} parent=0 // loop_footer
    %s16 = sadd.s32 1, %s12
  $region7: #{affa_forward.1} parent=0 // loop_footer_branch
    %11 = sbr.rel target = $region3
  $region8: #{affa_forward.1} parent=0 // loop_exit
    _

</llo_original>
